<compile_context>
chip_gen: v5e
topology: v5e:2x2
jax: 0.10.0
libtpu: 0.0.40
codegen_flags: <defaults>
</compile_context>

<pallas_src>
import jax
import jax.numpy as jnp
from jax.experimental import pallas as pl
from jax.experimental.pallas import tpu as pltpu

# Logical layer dims from the PyTorch module: 32 -> 64 -> 128 -> 256 -> 128 -> 32
DIMS = (32, 64, 128, 256, 128, 32)
# Lane-aligned *intermediate* widths (zero-padded weights; math is exact).
# Input (K=32) and output (N=32) are intentionally NOT padded.
PAD_DIMS = (32, 128, 128, 256, 128, 32)
N_LAYERS = len(DIMS) - 1


def _layer(h, w_ref, b_ref, relu):
    # bf16 x bf16 -> f32 accumulation on the MXU, f32 bias add on the VPU.
    h = jnp.dot(h, w_ref[...], preferred_element_type=jnp.float32) + b_ref[...]
    if relu:
        h = jnp.maximum(h, 0.0).astype(jnp.bfloat16)
    return h


def mlp_kernel(x_ref,
               w1_ref, b1_ref,
               w2_ref, b2_ref,
               w3_ref, b3_ref,
               w4_ref, b4_ref,
               w5_ref, b5_ref,
               o_ref):
    layers = ((w1_ref, b1_ref), (w2_ref, b2_ref), (w3_ref, b3_ref),
              (w4_ref, b4_ref), (w5_ref, b5_ref))
    tb = x_ref.shape[0]

    if tb >= 256 and tb % 16 == 0:
        # Two independent half-tile chains: the layer-(i+1) matmul of one half
        # overlaps the MXU result-FIFO drain of layer i of the other half.
        half = tb // 2
        ha = x_ref[:half, :].astype(jnp.bfloat16)
        hb = x_ref[half:, :].astype(jnp.bfloat16)
        for li, (w_ref, b_ref) in enumerate(layers):
            relu = li < N_LAYERS - 1
            ha = _layer(ha, w_ref, b_ref, relu)
            hb = _layer(hb, w_ref, b_ref, relu)
        o_ref[:half, :] = ha          # (half, 32) f32
        o_ref[half:, :] = hb
    else:
        h = x_ref[...].astype(jnp.bfloat16)
        for li, (w_ref, b_ref) in enumerate(layers):
            h = _layer(h, w_ref, b_ref, li < N_LAYERS - 1)
        o_ref[...] = h                # (tb, 32) f32


def _pad_params(params):
    """Cast weights to bf16 and zero-pad W/b to lane-aligned PAD_DIMS shapes.

    Zero padding is exact: padded input rows of layer i+1 only ever multiply
    the (zero) padded activation columns produced by layer i.
    """
    padded = []
    for i, (w, b) in enumerate(params):
        pin, pout = PAD_DIMS[i], PAD_DIMS[i + 1]
        w_p = jnp.zeros((pin, pout), jnp.bfloat16)
        w_p = w_p.at[: w.shape[0], : w.shape[1]].set(w.astype(jnp.bfloat16))
        b_p = jnp.zeros((1, pout), jnp.float32)
        b_p = b_p.at[:, : b.shape[1]].set(b.astype(jnp.float32))
        padded.append((w_p, b_p))
    return padded


def _choose_tb(batch):
    """Batch tile: one grid step for small batches; >=2 steps (megacore) and
    up to 2048-row tiles (multiple of 16) for larger ones."""
    if batch <= 512:
        return batch                      # single grid step; block == full batch
    half = -(-batch // 2)                 # ceil(batch / 2)
    return min(2048, max(16, (half // 16) * 16))


def _vmem_limit_bytes(tb, padded):
    """Scoped-VMEM request sized from actual usage, with headroom, capped at 32 MiB."""
    w_bytes = sum(w.size * w.dtype.itemsize + b.size * b.dtype.itemsize
                  for (w, b) in padded)
    io_bytes = 2 * tb * DIMS[0] * 4 + 2 * tb * DIMS[-1] * 4   # double-buffered in/out
    act_bytes = 4 * tb * max(PAD_DIMS) * 4                    # live intermediate headroom
    est = 2 * w_bytes + io_bytes + act_bytes
    return int(min(max(2 * est, 16 * 1024 * 1024), 32 * 1024 * 1024))


def mlp_forward(x, params, *, tb=None):
    """x: (B, 32) float32. params: list of (W_(in,out), b_(1,out)) f32. Returns (B, 32) f32."""
    B, d_in = x.shape
    assert d_in == DIMS[0]
    if tb is None:
        tb = _choose_tb(B)
    grid = pl.cdiv(B, tb)                 # partial last tile is masked by Pallas

    padded = _pad_params(params)

    # Batch is tiled over the grid; weights/biases use full-array blocks with a
    # constant block index, so they stay resident in VMEM across all grid steps.
    in_specs = [pl.BlockSpec((tb, DIMS[0]), lambda i: (i, 0))]
    flat_params = []
    for (w, b) in padded:
        in_specs.append(pl.BlockSpec(w.shape, lambda i: (0, 0)))
        in_specs.append(pl.BlockSpec(b.shape, lambda i: (0, 0)))
        flat_params.extend([w, b])

    # Real (tb, 32) output block: last dim equals the full array dim (legal),
    # HBM writeback is 128 B/row and there is no wrapper slice pass.
    out_spec = pl.BlockSpec((tb, DIMS[-1]), lambda i: (i, 0))

    flops = 2 * B * sum(PAD_DIMS[i] * PAD_DIMS[i + 1] for i in range(N_LAYERS))
    bytes_accessed = (x.size * 4
                      + B * DIMS[-1] * 4
                      + sum(w.size * 2 + b.size * 4 for (w, b) in padded))

    return pl.pallas_call(
        mlp_kernel,
        out_shape=jax.ShapeDtypeStruct((B, DIMS[-1]), jnp.float32),
        grid_spec=pltpu.PrefetchScalarGridSpec(
            num_scalar_prefetch=0,
            grid=(grid,),
            in_specs=in_specs,
            out_specs=out_spec,
        ),
        compiler_params=pltpu.CompilerParams(
            dimension_semantics=("parallel",),
            vmem_limit_bytes=_vmem_limit_bytes(tb, padded),
        ),
        cost_estimate=pl.CostEstimate(
            flops=flops, transcendentals=0, bytes_accessed=bytes_accessed),
    )(x, *flat_params)


def init_params(key):
    """Deterministic init matching PyTorch nn.Linear default: U(-1/sqrt(fan_in), +1/sqrt(fan_in))."""
    params = []
    for i in range(N_LAYERS):
        fan_in, fan_out = DIMS[i], DIMS[i + 1]
        key, kw, kb = jax.random.split(key, 3)
        bound = 1.0 / (fan_in ** 0.5)
        w = jax.random.uniform(kw, (fan_in, fan_out), jnp.float32, -bound, bound)
        b = jax.random.uniform(kb, (1, fan_out), jnp.float32, -bound, bound)
        params.append((w, b))
    return params


def mlp_reference(x, params, *, bf16):
    """Pure-JAX reference. bf16=True mirrors the kernel's precision exactly."""
    h = x.astype(jnp.bfloat16) if bf16 else x
    for li, (w, b) in enumerate(params):
        wc = w.astype(jnp.bfloat16) if bf16 else w
        h = jnp.dot(h, wc, preferred_element_type=jnp.float32) + b
        if li < N_LAYERS - 1:
            h = jnp.maximum(h, 0.0)
            if bf16:
                h = h.astype(jnp.bfloat16)
    return h


if __name__ == "__main__":
    key = jax.random.PRNGKey(0)
    kx, kp = jax.random.split(key)
    params = init_params(kp)

    # Small demo batch -> single grid step, straight 5-matmul chain.
    B = 16
    x = jax.random.normal(kx, (B, DIMS[0]), jnp.float32)
    out = jax.block_until_ready(mlp_forward(x, params))
    assert out.shape == (B, DIMS[-1])
    ref_bf16 = mlp_reference(x, params, bf16=True)
    assert jnp.allclose(out, ref_bf16, atol=1e-3, rtol=1e-3), "mismatch vs bf16-matched reference"
    ref_f32 = mlp_reference(x, params, bf16=False)
    assert jnp.allclose(out, ref_f32, atol=1e-1, rtol=1e-1), "mismatch vs f32 reference"

    # Irregular larger batch -> multi-step grid (>=2 steps for v7x megacore),
    # partial last tile via cdiv, interleaved two-half-tile MXU path.
    B2 = 600
    x2 = jax.random.normal(kx, (B2, DIMS[0]), jnp.float32)
    out2 = jax.block_until_ready(mlp_forward(x2, params))
    assert out2.shape == (B2, DIMS[-1])
    ref2 = mlp_reference(x2, params, bf16=True)
    assert jnp.allclose(out2, ref2, atol=1e-3, rtol=1e-3), "mismatch on irregular batch"

    print("KERNEL_OK")
</pallas_src>

<mosaic_0001>
module attributes {stable_mosaic.version = 11 : i64} {
  func.func @mlp_kernel(%arg0: i32, %arg1: memref<16x32xf32, #tpu.memory_space<vmem>>, %arg2: memref<32x128xbf16, #tpu.memory_space<vmem>>, %arg3: memref<1x128xf32, #tpu.memory_space<vmem>>, %arg4: memref<128x128xbf16, #tpu.memory_space<vmem>>, %arg5: memref<1x128xf32, #tpu.memory_space<vmem>>, %arg6: memref<128x256xbf16, #tpu.memory_space<vmem>>, %arg7: memref<1x256xf32, #tpu.memory_space<vmem>>, %arg8: memref<256x128xbf16, #tpu.memory_space<vmem>>, %arg9: memref<1x128xf32, #tpu.memory_space<vmem>>, %arg10: memref<128x32xbf16, #tpu.memory_space<vmem>>, %arg11: memref<1x32xf32, #tpu.memory_space<vmem>>, %arg12: memref<16x32xf32, #tpu.memory_space<vmem>>) attributes {dimension_semantics = [#tpu.dimension_semantics<parallel>], iteration_bounds = array<i64: 1>, scalar_prefetch = 0 : i64, scratch_operands = 0 : i64, tpu.core_type = #tpu.core_type<tc>, window_params = [{transform_indices = @transform_0, window_bounds = array<i64: 16, 32>}, {pipeline_mode = #tpu.pipeline_mode<synchronous>, transform_indices = @transform_1, window_bounds = array<i64: 32, 128>}, {pipeline_mode = #tpu.pipeline_mode<synchronous>, transform_indices = @transform_2, window_bounds = array<i64: 1, 128>}, {pipeline_mode = #tpu.pipeline_mode<synchronous>, transform_indices = @transform_3, window_bounds = array<i64: 128, 128>}, {pipeline_mode = #tpu.pipeline_mode<synchronous>, transform_indices = @transform_4, window_bounds = array<i64: 1, 128>}, {pipeline_mode = #tpu.pipeline_mode<synchronous>, transform_indices = @transform_5, window_bounds = array<i64: 128, 256>}, {pipeline_mode = #tpu.pipeline_mode<synchronous>, transform_indices = @transform_6, window_bounds = array<i64: 1, 256>}, {pipeline_mode = #tpu.pipeline_mode<synchronous>, transform_indices = @transform_7, window_bounds = array<i64: 256, 128>}, {pipeline_mode = #tpu.pipeline_mode<synchronous>, transform_indices = @transform_8, window_bounds = array<i64: 1, 128>}, {pipeline_mode = #tpu.pipeline_mode<synchronous>, transform_indices = @transform_9, window_bounds = array<i64: 128, 32>}, {pipeline_mode = #tpu.pipeline_mode<synchronous>, transform_indices = @transform_10, window_bounds = array<i64: 1, 32>}, {transform_indices = @transform_11, window_bounds = array<i64: 16, 32>}]} {
    %c0 = arith.constant 0 : index
    %c0_0 = arith.constant 0 : index
    %0 = vector.load %arg1[%c0, %c0_0] : memref<16x32xf32, #tpu.memory_space<vmem>>, vector<16x32xf32>
    %1 = arith.truncf %0 : vector<16x32xf32> to vector<16x32xbf16>
    %c0_1 = arith.constant 0 : index
    %c0_2 = arith.constant 0 : index
    %2 = vector.load %arg2[%c0_1, %c0_2] : memref<32x128xbf16, #tpu.memory_space<vmem>>, vector<32x128xbf16>
    %cst = arith.constant dense<0.000000e+00> : vector<16x128xf32>
    %3 = tpu.matmul %1, %2, %cst {dimension_numbers = #tpu.dot_dimension_numbers<[1], [0], [0], [1], [0, 0, 1, 1], [], []>} : vector<16x32xbf16>, vector<32x128xbf16>, vector<16x128xf32> -> vector<16x128xf32>
    %c0_3 = arith.constant 0 : index
    %c0_4 = arith.constant 0 : index
    %4 = vector.load %arg3[%c0_3, %c0_4] : memref<1x128xf32, #tpu.memory_space<vmem>>, vector<1x128xf32>
    %5 = vector.broadcast %4 : vector<1x128xf32> to vector<16x128xf32>
    %6 = arith.addf %3, %5 : vector<16x128xf32>
    %cst_5 = arith.constant 0.000000e+00 : f32
    %7 = vector.broadcast %cst_5 : f32 to vector<16x128xf32>
    %8 = arith.maximumf %6, %7 : vector<16x128xf32>
    %9 = arith.truncf %8 : vector<16x128xf32> to vector<16x128xbf16>
    %c0_6 = arith.constant 0 : index
    %c0_7 = arith.constant 0 : index
    %10 = vector.load %arg4[%c0_6, %c0_7] : memref<128x128xbf16, #tpu.memory_space<vmem>>, vector<128x128xbf16>
    %cst_8 = arith.constant dense<0.000000e+00> : vector<16x128xf32>
    %11 = tpu.matmul %9, %10, %cst_8 {dimension_numbers = #tpu.dot_dimension_numbers<[1], [0], [0], [1], [0, 0, 1, 1], [], []>} : vector<16x128xbf16>, vector<128x128xbf16>, vector<16x128xf32> -> vector<16x128xf32>
    %c0_9 = arith.constant 0 : index
    %c0_10 = arith.constant 0 : index
    %12 = vector.load %arg5[%c0_9, %c0_10] : memref<1x128xf32, #tpu.memory_space<vmem>>, vector<1x128xf32>
    %13 = vector.broadcast %12 : vector<1x128xf32> to vector<16x128xf32>
    %14 = arith.addf %11, %13 : vector<16x128xf32>
    %cst_11 = arith.constant 0.000000e+00 : f32
    %15 = vector.broadcast %cst_11 : f32 to vector<16x128xf32>
    %16 = arith.maximumf %14, %15 : vector<16x128xf32>
    %17 = arith.truncf %16 : vector<16x128xf32> to vector<16x128xbf16>
    %c0_12 = arith.constant 0 : index
    %c0_13 = arith.constant 0 : index
    %18 = vector.load %arg6[%c0_12, %c0_13] : memref<128x256xbf16, #tpu.memory_space<vmem>>, vector<128x256xbf16>
    %cst_14 = arith.constant dense<0.000000e+00> : vector<16x256xf32>
    %19 = tpu.matmul %17, %18, %cst_14 {dimension_numbers = #tpu.dot_dimension_numbers<[1], [0], [0], [1], [0, 0, 1, 1], [], []>} : vector<16x128xbf16>, vector<128x256xbf16>, vector<16x256xf32> -> vector<16x256xf32>
    %c0_15 = arith.constant 0 : index
    %c0_16 = arith.constant 0 : index
    %20 = vector.load %arg7[%c0_15, %c0_16] : memref<1x256xf32, #tpu.memory_space<vmem>>, vector<1x256xf32>
    %21 = vector.broadcast %20 : vector<1x256xf32> to vector<16x256xf32>
    %22 = arith.addf %19, %21 : vector<16x256xf32>
    %cst_17 = arith.constant 0.000000e+00 : f32
    %23 = vector.broadcast %cst_17 : f32 to vector<16x256xf32>
    %24 = arith.maximumf %22, %23 : vector<16x256xf32>
    %25 = arith.truncf %24 : vector<16x256xf32> to vector<16x256xbf16>
    %c0_18 = arith.constant 0 : index
    %c0_19 = arith.constant 0 : index
    %26 = vector.load %arg8[%c0_18, %c0_19] : memref<256x128xbf16, #tpu.memory_space<vmem>>, vector<256x128xbf16>
    %cst_20 = arith.constant dense<0.000000e+00> : vector<16x128xf32>
    %27 = tpu.matmul %25, %26, %cst_20 {dimension_numbers = #tpu.dot_dimension_numbers<[1], [0], [0], [1], [0, 0, 1, 1], [], []>} : vector<16x256xbf16>, vector<256x128xbf16>, vector<16x128xf32> -> vector<16x128xf32>
    %c0_21 = arith.constant 0 : index
    %c0_22 = arith.constant 0 : index
    %28 = vector.load %arg9[%c0_21, %c0_22] : memref<1x128xf32, #tpu.memory_space<vmem>>, vector<1x128xf32>
    %29 = vector.broadcast %28 : vector<1x128xf32> to vector<16x128xf32>
    %30 = arith.addf %27, %29 : vector<16x128xf32>
    %cst_23 = arith.constant 0.000000e+00 : f32
    %31 = vector.broadcast %cst_23 : f32 to vector<16x128xf32>
    %32 = arith.maximumf %30, %31 : vector<16x128xf32>
    %33 = arith.truncf %32 : vector<16x128xf32> to vector<16x128xbf16>
    %c0_24 = arith.constant 0 : index
    %c0_25 = arith.constant 0 : index
    %34 = vector.load %arg10[%c0_24, %c0_25] : memref<128x32xbf16, #tpu.memory_space<vmem>>, vector<128x32xbf16>
    %cst_26 = arith.constant dense<0.000000e+00> : vector<16x32xf32>
    %35 = tpu.matmul %33, %34, %cst_26 {dimension_numbers = #tpu.dot_dimension_numbers<[1], [0], [0], [1], [0, 0, 1, 1], [], []>} : vector<16x128xbf16>, vector<128x32xbf16>, vector<16x32xf32> -> vector<16x32xf32>
    %c0_27 = arith.constant 0 : index
    %c0_28 = arith.constant 0 : index
    %36 = vector.load %arg11[%c0_27, %c0_28] : memref<1x32xf32, #tpu.memory_space<vmem>>, vector<1x32xf32>
    %37 = vector.broadcast %36 : vector<1x32xf32> to vector<16x32xf32>
    %38 = arith.addf %35, %37 : vector<16x32xf32>
    %c0_29 = arith.constant 0 : index
    %c0_30 = arith.constant 0 : index
    %39 = vector.load %arg12[%c0_29, %c0_30] : memref<16x32xf32, #tpu.memory_space<vmem>>, vector<16x32xf32>
    tpu.vector_store %arg12[%c0_29, %c0_30], %38 {strides = array<i32>} : memref<16x32xf32, #tpu.memory_space<vmem>>, vector<16x32xf32>,
    return
  }
  func.func @transform_0(%arg0: i32) -> (i32, i32) {
    %c0_i32 = arith.constant 0 : i32
    %c0_i32_0 = arith.constant 0 : i32
    return %arg0, %c0_i32 : i32, i32
  }
  func.func @transform_1(%arg0: i32) -> (i32, i32) {
    %c0_i32 = arith.constant 0 : i32
    %c0_i32_0 = arith.constant 0 : i32
    %c0_i32_1 = arith.constant 0 : i32
    return %c0_i32, %c0_i32_0 : i32, i32
  }
  func.func @transform_2(%arg0: i32) -> (i32, i32) {
    %c0_i32 = arith.constant 0 : i32
    %c0_i32_0 = arith.constant 0 : i32
    %c0_i32_1 = arith.constant 0 : i32
    return %c0_i32, %c0_i32_0 : i32, i32
  }
  func.func @transform_3(%arg0: i32) -> (i32, i32) {
    %c0_i32 = arith.constant 0 : i32
    %c0_i32_0 = arith.constant 0 : i32
    %c0_i32_1 = arith.constant 0 : i32
    return %c0_i32, %c0_i32_0 : i32, i32
  }
  func.func @transform_4(%arg0: i32) -> (i32, i32) {
    %c0_i32 = arith.constant 0 : i32
    %c0_i32_0 = arith.constant 0 : i32
    %c0_i32_1 = arith.constant 0 : i32
    return %c0_i32, %c0_i32_0 : i32, i32
  }
  func.func @transform_5(%arg0: i32) -> (i32, i32) {
    %c0_i32 = arith.constant 0 : i32
    %c0_i32_0 = arith.constant 0 : i32
    %c0_i32_1 = arith.constant 0 : i32
    return %c0_i32, %c0_i32_0 : i32, i32
  }
  func.func @transform_6(%arg0: i32) -> (i32, i32) {
    %c0_i32 = arith.constant 0 : i32
    %c0_i32_0 = arith.constant 0 : i32
    %c0_i32_1 = arith.constant 0 : i32
    return %c0_i32, %c0_i32_0 : i32, i32
  }
  func.func @transform_7(%arg0: i32) -> (i32, i32) {
    %c0_i32 = arith.constant 0 : i32
    %c0_i32_0 = arith.constant 0 : i32
    %c0_i32_1 = arith.constant 0 : i32
    return %c0_i32, %c0_i32_0 : i32, i32
  }
  func.func @transform_8(%arg0: i32) -> (i32, i32) {
    %c0_i32 = arith.constant 0 : i32
    %c0_i32_0 = arith.constant 0 : i32
    %c0_i32_1 = arith.constant 0 : i32
    return %c0_i32, %c0_i32_0 : i32, i32
  }
  func.func @transform_9(%arg0: i32) -> (i32, i32) {
    %c0_i32 = arith.constant 0 : i32
    %c0_i32_0 = arith.constant 0 : i32
    %c0_i32_1 = arith.constant 0 : i32
    return %c0_i32, %c0_i32_0 : i32, i32
  }
  func.func @transform_10(%arg0: i32) -> (i32, i32) {
    %c0_i32 = arith.constant 0 : i32
    %c0_i32_0 = arith.constant 0 : i32
    %c0_i32_1 = arith.constant 0 : i32
    return %c0_i32, %c0_i32_0 : i32, i32
  }
  func.func @transform_11(%arg0: i32) -> (i32, i32) {
    %c0_i32 = arith.constant 0 : i32
    %c0_i32_0 = arith.constant 0 : i32
    return %arg0, %c0_i32 : i32, i32
  }
}

</mosaic_0001>

<llo_original>
// kernel: tpu_custom_call.1
$region0: #{tpu_custom_call.1}
  #allocation0 [shape = 'u32[]', space=smem, size = 0x4, offset = 0x4, fixed_abs, tag = 'smem constant byte address 0x4 - core index']
  #allocation1 [shape = 'u32[72,128]{1,0:T(1,128)}', space=vmem, size = 0x9000, scoped, tag = 'internal scratch']
  %s0 = inlined_call_operand.vmem [shape: f32[16,32], index: 0, kind: input, shape index: {}]
  %s1 = inlined_call_operand.hbm [shape: bf16[32,128], index: 1, kind: input, shape index: {}]
  %s2 = inlined_call_operand.hbm [shape: f32[1,128], index: 2, kind: input, shape index: {}]
  %s3 = inlined_call_operand.vmem [shape: bf16[128,128], index: 3, kind: input, shape index: {}]
  %s4 = inlined_call_operand.vmem [shape: f32[1,128], index: 4, kind: input, shape index: {}]
  %s5 = inlined_call_operand.hbm [shape: bf16[128,256], index: 5, kind: input, shape index: {}]
  %s6 = inlined_call_operand.vmem [shape: f32[1,256], index: 6, kind: input, shape index: {}]
  %s7 = inlined_call_operand.hbm [shape: bf16[256,128], index: 7, kind: input, shape index: {}]
  %s8 = inlined_call_operand.vmem [shape: f32[1,128], index: 8, kind: input, shape index: {}]
  %s9 = inlined_call_operand.vmem [shape: bf16[128,32], index: 9, kind: input, shape index: {}]
  %s10 = inlined_call_operand.vmem [shape: f32[1,32], index: 10, kind: input, shape index: {}]
  %s11 = inlined_call_operand.hbm [shape: f32[16,32], index: 11, kind: output, shape index: {}]
  %s12 = sld [smem:[#allocation0]]
  $region70: #{tpu_custom_call.1} parent=0
    _
  %s14 = ssub.s32 1, %s12
  %s15 = scalar_select 0, %s14, %s12
  $region1: #{tpu_custom_call.1} parent=0
    #allocation2 [shape = 'u8[8192]{0}', space=vmem, size = 0x2000, scoped, tag = 'input window, operand 1, single buffered']
    #allocation3 [shape = 's32[1]{0}', space=sflag, size = 0x4, scoped, tag = 'scoped memory for tpu_custom_call.1']
    #allocation4 [shape = 's32[1]{0}', space=sflag, size = 0x4, scoped, tag = 'scoped memory for tpu_custom_call.1']
    #allocation5 [shape = 'u8[512]{0}', space=vmem, size = 0x400, scoped, tag = 'input window, operand 2, single buffered']
    #allocation6 [shape = 's32[1]{0}', space=sflag, size = 0x4, scoped, tag = 'scoped memory for tpu_custom_call.1']
    #allocation7 [shape = 'u8[65536]{0}', space=vmem, size = 0x10000, scoped, tag = 'input window, operand 5, single buffered']
    #allocation8 [shape = 'u8[65536]{0}', space=vmem, size = 0x10000, scoped, tag = 'input window, operand 7, single buffered']
    #allocation9 [shape = 's32[1]{0}', space=sflag, size = 0x4, scoped, tag = 'scoped memory for tpu_custom_call.1']
    #allocation10 [shape = 'u8[8192]{0}', space=vmem, size = 0x2000, scoped, tag = 'output window, operand 0, single buffered']
    %16 = vsyncpa [#allocation3], 0
    %17 = vsyncpa [#allocation6], 0
    %18 = vsyncpa [#allocation9], 0
    %19 = vsyncpa [#allocation4], 0
    // Predicated region
    $region2: #{tpu_custom_call.1} parent=1 // pred_check
      _
    $region3: #{tpu_custom_call.1} parent=1 // pred_check_branch
      %21 = sbr.rel (0) target = $region5
    $region4: #{tpu_custom_call.1} parent=1 // pred_region
      _
    $region5: #{tpu_custom_call.1} parent=1 // pred_fallthru
      _
    // Predicated region
    $region6: #{tpu_custom_call.1} parent=1 // pred_check
      _
    $region7: #{tpu_custom_call.1} parent=1 // pred_check_branch
      %23 = sbr.rel (0) target = $region9
    $region8: #{tpu_custom_call.1} parent=1 // pred_region
      %25 = vsyncadd [#allocation3], 0
      %s26 = sshll.u32 %s1, 4
      %s27 = int_to_ptr.hbm [resolvable:$true] %s26
      %s28 = sshll.u32 [#allocation2], 4
      %s29 = int_to_ptr.vmem [resolvable:$true] %s28
      %34 = dma.hbm_to_vmem [thread:$0]  %s27, 256, %s29, [#allocation3], 64, 64, 4
    $region9: #{tpu_custom_call.1} parent=1 // pred_fallthru
      _
    // Predicated region
    $region10: #{tpu_custom_call.1} parent=1 // pred_check
      _
    $region11: #{tpu_custom_call.1} parent=1 // pred_check_branch
      %36 = sbr.rel (0) target = $region13
    $region12: #{tpu_custom_call.1} parent=1 // pred_region
      %38 = vsyncadd [#allocation6], 0
      %s40 = sshll.u32 %s2, 4
      %s41 = int_to_ptr.hbm [resolvable:$true] %s40
      %s42 = sshll.u32 [#allocation5], 4
      %s43 = int_to_ptr.vmem [resolvable:$true] %s42
      %45 = dma.hbm_to_vmem [thread:$0]  %s41, 16, %s43, [#allocation6]
    $region13: #{tpu_custom_call.1} parent=1 // pred_fallthru
      _
    // Predicated region
    $region14: #{tpu_custom_call.1} parent=1 // pred_check
      _
    $region15: #{tpu_custom_call.1} parent=1 // pred_check_branch
      %47 = sbr.rel (0) target = $region17
    $region16: #{tpu_custom_call.1} parent=1 // pred_region
      _
    $region17: #{tpu_custom_call.1} parent=1 // pred_fallthru
      _
    // Predicated region
    $region18: #{tpu_custom_call.1} parent=1 // pred_check
      _
    $region19: #{tpu_custom_call.1} parent=1 // pred_check_branch
      %49 = sbr.rel (0) target = $region21
    $region20: #{tpu_custom_call.1} parent=1 // pred_region
      _
    $region21: #{tpu_custom_call.1} parent=1 // pred_fallthru
      _
    // Predicated region
    $region22: #{tpu_custom_call.1} parent=1 // pred_check
      _
    $region23: #{tpu_custom_call.1} parent=1 // pred_check_branch
      %51 = sbr.rel (0) target = $region25
    $region24: #{tpu_custom_call.1} parent=1 // pred_region
      %53 = vsyncadd [#allocation6], 0
      %s54 = sshll.u32 %s5, 4
      %s55 = int_to_ptr.hbm [resolvable:$true] %s54
      %s56 = sshll.u32 [#allocation7], 4
      %s57 = int_to_ptr.vmem [resolvable:$true] %s56
      %62 = dma.hbm_to_vmem [thread:$0]  %s55, 2048, %s57, [#allocation6], 128, 128, 8
    $region25: #{tpu_custom_call.1} parent=1 // pred_fallthru
      _
    // Predicated region
    $region26: #{tpu_custom_call.1} parent=1 // pred_check
      _
    $region27: #{tpu_custom_call.1} parent=1 // pred_check_branch
      %64 = sbr.rel (0) target = $region29
    $region28: #{tpu_custom_call.1} parent=1 // pred_region
      _
    $region29: #{tpu_custom_call.1} parent=1 // pred_fallthru
      _
    // Predicated region
    $region30: #{tpu_custom_call.1} parent=1 // pred_check
      _
    $region31: #{tpu_custom_call.1} parent=1 // pred_check_branch
      %66 = sbr.rel (0) target = $region33
    $region32: #{tpu_custom_call.1} parent=1 // pred_region
      %68 = vsyncadd [#allocation9], 0
      %s69 = sshll.u32 %s7, 4
      %s70 = int_to_ptr.hbm [resolvable:$true] %s69
      %s71 = sshll.u32 [#allocation8], 4
      %s72 = int_to_ptr.vmem [resolvable:$true] %s71
      %77 = dma.hbm_to_vmem [thread:$0]  %s70, 2048, %s72, [#allocation9], 64, 64, 4
    $region33: #{tpu_custom_call.1} parent=1 // pred_fallthru
      _
    // Predicated region
    $region34: #{tpu_custom_call.1} parent=1 // pred_check
      _
    $region35: #{tpu_custom_call.1} parent=1 // pred_check_branch
      %79 = sbr.rel (0) target = $region37
    $region36: #{tpu_custom_call.1} parent=1 // pred_region
      _
    $region37: #{tpu_custom_call.1} parent=1 // pred_fallthru
      _
    // Predicated region
    $region38: #{tpu_custom_call.1} parent=1 // pred_check
      _
    $region39: #{tpu_custom_call.1} parent=1 // pred_check_branch
      %81 = sbr.rel (0) target = $region41
    $region40: #{tpu_custom_call.1} parent=1 // pred_region
      _
    $region41: #{tpu_custom_call.1} parent=1 // pred_fallthru
      _
    // Predicated region
    $region42: #{tpu_custom_call.1} parent=1 // pred_check
      _
    $region43: #{tpu_custom_call.1} parent=1 // pred_check_branch
      %83 = sbr.rel (0) target = $region45
    $region44: #{tpu_custom_call.1} parent=1 // pred_region
      _
    $region45: #{tpu_custom_call.1} parent=1 // pred_fallthru
      _
    // Predicated region
    $region46: #{tpu_custom_call.1} parent=1 // pred_check
      _
    $region47: #{tpu_custom_call.1} parent=1 // pred_check_branch
      %85 = sbr.rel (0) target = $region49
    $region48: #{tpu_custom_call.1} parent=1 // pred_region
      %87 = dma.done [#allocation3], 256
    $region49: #{tpu_custom_call.1} parent=1 // pred_fallthru
      _
    // Predicated region
    $region50: #{tpu_custom_call.1} parent=1 // pred_check
      _
    $region51: #{tpu_custom_call.1} parent=1 // pred_check_branch
      %89 = sbr.rel (0) target = $region53
    $region52: #{tpu_custom_call.1} parent=1 // pred_region
      %91 = dma.done [#allocation6], 16
    $region53: #{tpu_custom_call.1} parent=1 // pred_fallthru
      _
    // Predicated region
    $region54: #{tpu_custom_call.1} parent=1 // pred_check
      _
    $region55: #{tpu_custom_call.1} parent=1 // pred_check_branch
      %93 = sbr.rel (0) target = $region57
    $region56: #{tpu_custom_call.1} parent=1 // pred_region
      %95 = dma.done [#allocation6], 2048
    $region57: #{tpu_custom_call.1} parent=1 // pred_fallthru
      _
    // Predicated region
    $region58: #{tpu_custom_call.1} parent=1 // pred_check
      _
    $region59: #{tpu_custom_call.1} parent=1 // pred_check_branch
      %97 = sbr.rel (0) target = $region61
    $region60: #{tpu_custom_call.1} parent=1 // pred_region
      %99 = dma.done [#allocation9], 2048
    $region61: #{tpu_custom_call.1} parent=1 // pred_fallthru
      _
    %v101 = vld [vmem:[%s0] sm:$0xff]
    %v102 = vld [vmem:[%s0 + $0x8] sm:$0xff]
    %v103 = vpack.c.bf16 %v102, %v101
    %v104 = vld [vmem:[#allocation2] sm:$0xf]
    %v105 = vld [vmem:[#allocation2 + $0x4] sm:$0xf]
    %v106 = vld [vmem:[#allocation2 + $0x8] sm:$0xf]
    %v107 = vld [vmem:[#allocation2 + $0xc] sm:$0xf]
    %v108 = vld [vmem:[#allocation5] sm:$0x1]
    %v110 = vperm.slane %v108, 0
    %v116 = vunpack.c.l.b16 %v104
    %v117 = vunpack.c.l.b16 %v105
    %v118 = vunpack.c.l.b16 %v106
    %v119 = vunpack.c.l.b16 %v107
    %v120 = vpack.c.b16 %v117, %v116
    %v121 = vpack.c.b16 %v119, %v118
    %vm124 = vcmask 261120
    %v126 = vsel %vm124, %v103, 0
    %128 = vmatpush.bf16.msra.mxu0 0
    %129 = vmatpush.bf16.msra.mxu0 0
    %130 = vmatpush.bf16.msra.mxu0 0
    %131 = vmatpush.bf16.msra.mxu0 0
    %132 = vmatpush.bf16.msra.mxu0 0
    %133 = vmatpush.bf16.msra.mxu0 0
    %134 = vmatpush.bf16.msra.mxu0 %v121
    %135 = vmatpush.bf16.msra.mxu0 %v120
    %136 = vmatmul.bf16.gmra.mxu0 %v126
    %v137 = vpop.f32.mrf.mxu0
    %v138 = vadd.f32 %v110, %v137
    %v139 = vpop.f32.mrf.mxu0
    %v140 = vadd.f32 %v110, %v139
    %141 = vdwg.mxu0
    %v142 = vmax.f32 %v138, 0.0
    %v143 = vmax.f32 %v140, 0.0
    %v144 = vpack.c.bf16 %v143, %v142
    %v145 = vld [vmem:[%s3] sm:$0xf]
    %v146 = vld [vmem:[%s3 + $0x4] sm:$0xf]
    %v147 = vld [vmem:[%s3 + $0x8] sm:$0xf]
    %v148 = vld [vmem:[%s3 + $0xc] sm:$0xf]
    %v149 = vld [vmem:[%s3 + $0x10] sm:$0xf]
    %v150 = vld [vmem:[%s3 + $0x14] sm:$0xf]
    %v151 = vld [vmem:[%s3 + $0x18] sm:$0xf]
    %v152 = vld [vmem:[%s3 + $0x1c] sm:$0xf]
    %v153 = vld [vmem:[%s3 + $0x20] sm:$0xf]
    %v154 = vld [vmem:[%s3 + $0x24] sm:$0xf]
    %v155 = vld [vmem:[%s3 + $0x28] sm:$0xf]
    %v156 = vld [vmem:[%s3 + $0x2c] sm:$0xf]
    %v157 = vld [vmem:[%s3 + $0x30] sm:$0xf]
    %v158 = vld [vmem:[%s3 + $0x34] sm:$0xf]
    %v159 = vld [vmem:[%s3 + $0x38] sm:$0xf]
    %v160 = vld [vmem:[%s3 + $0x3c] sm:$0xf]
    %v161 = vld [vmem:[%s4] sm:$0x1]
    %v163 = vperm.slane %v161, 0
    %v181 = vunpack.c.l.b16 %v145
    %v182 = vunpack.c.l.b16 %v146
    %v183 = vunpack.c.l.b16 %v147
    %v184 = vunpack.c.l.b16 %v148
    %v185 = vunpack.c.l.b16 %v149
    %v186 = vunpack.c.l.b16 %v150
    %v187 = vunpack.c.l.b16 %v151
    %v188 = vunpack.c.l.b16 %v152
    %v189 = vunpack.c.l.b16 %v153
    %v190 = vunpack.c.l.b16 %v154
    %v191 = vunpack.c.l.b16 %v155
    %v192 = vunpack.c.l.b16 %v156
    %v193 = vunpack.c.l.b16 %v157
    %v194 = vunpack.c.l.b16 %v158
    %v195 = vunpack.c.l.b16 %v159
    %v196 = vunpack.c.l.b16 %v160
    %v197 = vpack.c.b16 %v182, %v181
    %v198 = vpack.c.b16 %v184, %v183
    %v199 = vpack.c.b16 %v186, %v185
    %v200 = vpack.c.b16 %v188, %v187
    %v201 = vpack.c.b16 %v190, %v189
    %v202 = vpack.c.b16 %v192, %v191
    %v203 = vpack.c.b16 %v194, %v193
    %v204 = vpack.c.b16 %v196, %v195
    %213 = vmatpush.bf16.msra.mxu0 %v204
    %214 = vmatpush.bf16.msra.mxu0 %v203
    %215 = vmatpush.bf16.msra.mxu0 %v202
    %216 = vmatpush.bf16.msra.mxu0 %v201
    %217 = vmatpush.bf16.msra.mxu0 %v200
    %218 = vmatpush.bf16.msra.mxu0 %v199
    %219 = vmatpush.bf16.msra.mxu0 %v198
    %220 = vmatpush.bf16.msra.mxu0 %v197
    %221 = vmatmul.bf16.gmra.mxu0 %v144
    %v222 = vpop.f32.mrf.mxu0
    %v223 = vadd.f32 %v163, %v222
    %v224 = vpop.f32.mrf.mxu0
    %v225 = vadd.f32 %v163, %v224
    %226 = vdwg.mxu0
    %v227 = vmax.f32 %v223, 0.0
    %v228 = vmax.f32 %v225, 0.0
    %v229 = vpack.c.bf16 %v228, %v227
    %v230 = vld [vmem:[#allocation7] sm:$0xff]
    %v231 = vld [vmem:[#allocation7 + $0x8] sm:$0xff]
    %v232 = vld [vmem:[#allocation7 + $0x10] sm:$0xff]
    %v233 = vld [vmem:[#allocation7 + $0x18] sm:$0xff]
    %v234 = vld [vmem:[#allocation7 + $0x20] sm:$0xff]
    %v235 = vld [vmem:[#allocation7 + $0x28] sm:$0xff]
    %v236 = vld [vmem:[#allocation7 + $0x30] sm:$0xff]
    %v237 = vld [vmem:[#allocation7 + $0x38] sm:$0xff]
    %v238 = vld [vmem:[#allocation7 + $0x40] sm:$0xff]
    %v239 = vld [vmem:[#allocation7 + $0x48] sm:$0xff]
    %v240 = vld [vmem:[#allocation7 + $0x50] sm:$0xff]
    %v241 = vld [vmem:[#allocation7 + $0x58] sm:$0xff]
    %v242 = vld [vmem:[#allocation7 + $0x60] sm:$0xff]
    %v243 = vld [vmem:[#allocation7 + $0x68] sm:$0xff]
    %v244 = vld [vmem:[#allocation7 + $0x70] sm:$0xff]
    %v245 = vld [vmem:[#allocation7 + $0x78] sm:$0xff]
    %v246 = vld [vmem:[%s6] sm:$0x3]
    %v248 = vperm.slane %v246, 0
    %v249 = vperm.slane %v246, 1
    %v268 = vunpack.c.l.b16 %v230
    %v269 = vunpack.c.h.b16 %v230
    %v270 = vunpack.c.l.b16 %v231
    %v271 = vunpack.c.h.b16 %v231
    %v272 = vunpack.c.l.b16 %v232
    %v273 = vunpack.c.h.b16 %v232
    %v274 = vunpack.c.l.b16 %v233
    %v275 = vunpack.c.h.b16 %v233
    %v276 = vunpack.c.l.b16 %v234
    %v277 = vunpack.c.h.b16 %v234
    %v278 = vunpack.c.l.b16 %v235
    %v279 = vunpack.c.h.b16 %v235
    %v280 = vunpack.c.l.b16 %v236
    %v281 = vunpack.c.h.b16 %v236
    %v282 = vunpack.c.l.b16 %v237
    %v283 = vunpack.c.h.b16 %v237
    %v284 = vunpack.c.l.b16 %v238
    %v285 = vunpack.c.h.b16 %v238
    %v286 = vunpack.c.l.b16 %v239
    %v287 = vunpack.c.h.b16 %v239
    %v288 = vunpack.c.l.b16 %v240
    %v289 = vunpack.c.h.b16 %v240
    %v290 = vunpack.c.l.b16 %v241
    %v291 = vunpack.c.h.b16 %v241
    %v292 = vunpack.c.l.b16 %v242
    %v293 = vunpack.c.h.b16 %v242
    %v294 = vunpack.c.l.b16 %v243
    %v295 = vunpack.c.h.b16 %v243
    %v296 = vunpack.c.l.b16 %v244
    %v297 = vunpack.c.h.b16 %v244
    %v298 = vunpack.c.l.b16 %v245
    %v299 = vunpack.c.h.b16 %v245
    %v300 = vpack.c.b16 %v270, %v268
    %v301 = vpack.c.b16 %v271, %v269
    %v302 = vpack.c.b16 %v274, %v272
    %v303 = vpack.c.b16 %v275, %v273
    %v304 = vpack.c.b16 %v278, %v276
    %v305 = vpack.c.b16 %v279, %v277
    %v306 = vpack.c.b16 %v282, %v280
    %v307 = vpack.c.b16 %v283, %v281
    %v308 = vpack.c.b16 %v286, %v284
    %v309 = vpack.c.b16 %v287, %v285
    %v310 = vpack.c.b16 %v290, %v288
    %v311 = vpack.c.b16 %v291, %v289
    %v312 = vpack.c.b16 %v294, %v292
    %v313 = vpack.c.b16 %v295, %v293
    %v314 = vpack.c.b16 %v298, %v296
    %v315 = vpack.c.b16 %v299, %v297
    %332 = vmatpush.bf16.msra.mxu0 %v314
    %333 = vmatpush.bf16.msra.mxu0 %v312
    %334 = vmatpush.bf16.msra.mxu0 %v310
    %335 = vmatpush.bf16.msra.mxu0 %v308
    %336 = vmatpush.bf16.msra.mxu0 %v306
    %337 = vmatpush.bf16.msra.mxu0 %v304
    %338 = vmatpush.bf16.msra.mxu0 %v302
    %339 = vmatpush.bf16.msra.mxu0 %v300
    %340 = vmatmul.bf16.gmra.mxu0 %v229
    %v341 = vpop.f32.mrf.mxu0
    %v342 = vadd.f32 %v248, %v341
    %v343 = vpop.f32.mrf.mxu0
    %v344 = vadd.f32 %v248, %v343
    %345 = vdwg.mxu0
    %346 = vmatpush.bf16.msra.mxu0 %v315
    %347 = vmatpush.bf16.msra.mxu0 %v313
    %348 = vmatpush.bf16.msra.mxu0 %v311
    %349 = vmatpush.bf16.msra.mxu0 %v309
    %350 = vmatpush.bf16.msra.mxu0 %v307
    %351 = vmatpush.bf16.msra.mxu0 %v305
    %352 = vmatpush.bf16.msra.mxu0 %v303
    %353 = vmatpush.bf16.msra.mxu0 %v301
    %354 = vmatmul.bf16.gmra.mxu0 %v229
    %v355 = vpop.f32.mrf.mxu0
    %v356 = vadd.f32 %v249, %v355
    %v357 = vpop.f32.mrf.mxu0
    %v358 = vadd.f32 %v249, %v357
    %359 = vdwg.mxu0
    %v360 = vmax.f32 %v342, 0.0
    %v361 = vmax.f32 %v356, 0.0
    %v362 = vmax.f32 %v344, 0.0
    %v363 = vmax.f32 %v358, 0.0
    %v364 = vpack.c.bf16 %v362, %v360
    %v365 = vpack.c.bf16 %v363, %v361
    %v366 = vld [vmem:[#allocation8] sm:$0xf]
    %v367 = vld [vmem:[#allocation8 + $0x4] sm:$0xf]
    %v368 = vld [vmem:[#allocation8 + $0x8] sm:$0xf]
    %v369 = vld [vmem:[#allocation8 + $0xc] sm:$0xf]
    %v370 = vld [vmem:[#allocation8 + $0x10] sm:$0xf]
    %v371 = vld [vmem:[#allocation8 + $0x14] sm:$0xf]
    %v372 = vld [vmem:[#allocation8 + $0x18] sm:$0xf]
    %v373 = vld [vmem:[#allocation8 + $0x1c] sm:$0xf]
    %v374 = vld [vmem:[#allocation8 + $0x20] sm:$0xf]
    %v375 = vld [vmem:[#allocation8 + $0x24] sm:$0xf]
    %v376 = vld [vmem:[#allocation8 + $0x28] sm:$0xf]
    %v377 = vld [vmem:[#allocation8 + $0x2c] sm:$0xf]
    %v378 = vld [vmem:[#allocation8 + $0x30] sm:$0xf]
    %v379 = vld [vmem:[#allocation8 + $0x34] sm:$0xf]
    %v380 = vld [vmem:[#allocation8 + $0x38] sm:$0xf]
    %v381 = vld [vmem:[#allocation8 + $0x3c] sm:$0xf]
    %v382 = vld [vmem:[#allocation8 + $0x40] sm:$0xf]
    %v383 = vld [vmem:[#allocation8 + $0x44] sm:$0xf]
    %v384 = vld [vmem:[#allocation8 + $0x48] sm:$0xf]
    %v385 = vld [vmem:[#allocation8 + $0x4c] sm:$0xf]
    %v386 = vld [vmem:[#allocation8 + $0x50] sm:$0xf]
    %v387 = vld [vmem:[#allocation8 + $0x54] sm:$0xf]
    %v388 = vld [vmem:[#allocation8 + $0x58] sm:$0xf]
    %v389 = vld [vmem:[#allocation8 + $0x5c] sm:$0xf]
    %v390 = vld [vmem:[#allocation8 + $0x60] sm:$0xf]
    %v391 = vld [vmem:[#allocation8 + $0x64] sm:$0xf]
    %v392 = vld [vmem:[#allocation8 + $0x68] sm:$0xf]
    %v393 = vld [vmem:[#allocation8 + $0x6c] sm:$0xf]
    %v394 = vld [vmem:[#allocation8 + $0x70] sm:$0xf]
    %v395 = vld [vmem:[#allocation8 + $0x74] sm:$0xf]
    %v396 = vld [vmem:[#allocation8 + $0x78] sm:$0xf]
    %v397 = vld [vmem:[#allocation8 + $0x7c] sm:$0xf]
    %v398 = vld [vmem:[%s8] sm:$0x1]
    %v400 = vperm.slane %v398, 0
    %v434 = vunpack.c.l.b16 %v366
    %v435 = vunpack.c.l.b16 %v367
    %v436 = vunpack.c.l.b16 %v368
    %v437 = vunpack.c.l.b16 %v369
    %v438 = vunpack.c.l.b16 %v370
    %v439 = vunpack.c.l.b16 %v371
    %v440 = vunpack.c.l.b16 %v372
    %v441 = vunpack.c.l.b16 %v373
    %v442 = vunpack.c.l.b16 %v374
    %v443 = vunpack.c.l.b16 %v375
    %v444 = vunpack.c.l.b16 %v376
    %v445 = vunpack.c.l.b16 %v377
    %v446 = vunpack.c.l.b16 %v378
    %v447 = vunpack.c.l.b16 %v379
    %v448 = vunpack.c.l.b16 %v380
    %v449 = vunpack.c.l.b16 %v381
    %v450 = vunpack.c.l.b16 %v382
    %v451 = vunpack.c.l.b16 %v383
    %v452 = vunpack.c.l.b16 %v384
    %v453 = vunpack.c.l.b16 %v385
    %v454 = vunpack.c.l.b16 %v386
    %v455 = vunpack.c.l.b16 %v387
    %v456 = vunpack.c.l.b16 %v388
    %v457 = vunpack.c.l.b16 %v389
    %v458 = vunpack.c.l.b16 %v390
    %v459 = vunpack.c.l.b16 %v391
    %v460 = vunpack.c.l.b16 %v392
    %v461 = vunpack.c.l.b16 %v393
    %v462 = vunpack.c.l.b16 %v394
    %v463 = vunpack.c.l.b16 %v395
    %v464 = vunpack.c.l.b16 %v396
    %v465 = vunpack.c.l.b16 %v397
    %v466 = vpack.c.b16 %v435, %v434
    %v467 = vpack.c.b16 %v437, %v436
    %v468 = vpack.c.b16 %v439, %v438
    %v469 = vpack.c.b16 %v441, %v440
    %v470 = vpack.c.b16 %v443, %v442
    %v471 = vpack.c.b16 %v445, %v444
    %v472 = vpack.c.b16 %v447, %v446
    %v473 = vpack.c.b16 %v449, %v448
    %v474 = vpack.c.b16 %v451, %v450
    %v475 = vpack.c.b16 %v453, %v452
    %v476 = vpack.c.b16 %v455, %v454
    %v477 = vpack.c.b16 %v457, %v456
    %v478 = vpack.c.b16 %v459, %v458
    %v479 = vpack.c.b16 %v461, %v460
    %v480 = vpack.c.b16 %v463, %v462
    %v481 = vpack.c.b16 %v465, %v464
    %498 = vmatpush.bf16.msra.mxu0 %v473
    %499 = vmatpush.bf16.msra.mxu0 %v472
    %500 = vmatpush.bf16.msra.mxu0 %v471
    %501 = vmatpush.bf16.msra.mxu0 %v470
    %502 = vmatpush.bf16.msra.mxu0 %v469
    %503 = vmatpush.bf16.msra.mxu0 %v468
    %504 = vmatpush.bf16.msra.mxu0 %v467
    %505 = vmatpush.bf16.msra.mxu0 %v466
    %506 = vmatmul.bf16.gmra.mxu0 %v364
    %v507 = vpop.f32.mrf.mxu0
    %v508 = vadd.f32 %v400, %v507
    %v509 = vpop.f32.mrf.mxu0
    %v510 = vadd.f32 %v400, %v509
    %511 = vdwg.mxu0
    %512 = vmatpush.bf16.msra.mxu0 %v481
    %513 = vmatpush.bf16.msra.mxu0 %v480
    %514 = vmatpush.bf16.msra.mxu0 %v479
    %515 = vmatpush.bf16.msra.mxu0 %v478
    %516 = vmatpush.bf16.msra.mxu0 %v477
    %517 = vmatpush.bf16.msra.mxu0 %v476
    %518 = vmatpush.bf16.msra.mxu0 %v475
    %519 = vmatpush.bf16.msra.mxu0 %v474
    %520 = vmatmul.bf16.gmra.mxu0 %v365
    %v521 = vpop.f32.mrf.mxu0
    %v522 = vadd.f32 %v508, %v521
    %v523 = vpop.f32.mrf.mxu0
    %v524 = vadd.f32 %v510, %v523
    %525 = vdwg.mxu0
    %v526 = vmax.f32 %v522, 0.0
    %v527 = vmax.f32 %v524, 0.0
    %v528 = vpack.c.bf16 %v527, %v526
    %v529 = vld [vmem:[%s9] sm:$0xf]
    %v530 = vld [vmem:[%s9 + $0x4] sm:$0xf]
    %v531 = vld [vmem:[%s9 + $0x8] sm:$0xf]
    %v532 = vld [vmem:[%s9 + $0xc] sm:$0xf]
    %v533 = vld [vmem:[%s9 + $0x10] sm:$0xf]
    %v534 = vld [vmem:[%s9 + $0x14] sm:$0xf]
    %v535 = vld [vmem:[%s9 + $0x18] sm:$0xf]
    %v536 = vld [vmem:[%s9 + $0x1c] sm:$0xf]
    %v537 = vld [vmem:[%s9 + $0x20] sm:$0xf]
    %v538 = vld [vmem:[%s9 + $0x24] sm:$0xf]
    %v539 = vld [vmem:[%s9 + $0x28] sm:$0xf]
    %v540 = vld [vmem:[%s9 + $0x2c] sm:$0xf]
    %v541 = vld [vmem:[%s9 + $0x30] sm:$0xf]
    %v542 = vld [vmem:[%s9 + $0x34] sm:$0xf]
    %v543 = vld [vmem:[%s9 + $0x38] sm:$0xf]
    %v544 = vld [vmem:[%s9 + $0x3c] sm:$0xf]
    %v545 = vld [vmem:[%s10] sm:$0x1]
    %v547 = vperm.slane %v545, 0
    %v565 = vunpack.c.l.b16 %v529
    %v566 = vunpack.c.l.b16 %v530
    %v567 = vunpack.c.l.b16 %v531
    %v568 = vunpack.c.l.b16 %v532
    %v569 = vunpack.c.l.b16 %v533
    %v570 = vunpack.c.l.b16 %v534
    %v571 = vunpack.c.l.b16 %v535
    %v572 = vunpack.c.l.b16 %v536
    %v573 = vunpack.c.l.b16 %v537
    %v574 = vunpack.c.l.b16 %v538
    %v575 = vunpack.c.l.b16 %v539
    %v576 = vunpack.c.l.b16 %v540
    %v577 = vunpack.c.l.b16 %v541
    %v578 = vunpack.c.l.b16 %v542
    %v579 = vunpack.c.l.b16 %v543
    %v580 = vunpack.c.l.b16 %v544
    %v581 = vpack.c.b16 %v566, %v565
    %v582 = vpack.c.b16 %v568, %v567
    %v583 = vpack.c.b16 %v570, %v569
    %v584 = vpack.c.b16 %v572, %v571
    %v585 = vpack.c.b16 %v574, %v573
    %v586 = vpack.c.b16 %v576, %v575
    %v587 = vpack.c.b16 %v578, %v577
    %v588 = vpack.c.b16 %v580, %v579
    %597 = vmatpush.bf16.msra.mxu0 %v588
    %598 = vmatpush.bf16.msra.mxu0 %v587
    %599 = vmatpush.bf16.msra.mxu0 %v586
    %600 = vmatpush.bf16.msra.mxu0 %v585
    %601 = vmatpush.bf16.msra.mxu0 %v584
    %602 = vmatpush.bf16.msra.mxu0 %v583
    %603 = vmatpush.bf16.msra.mxu0 %v582
    %604 = vmatpush.bf16.msra.mxu0 %v581
    %605 = vmatmul.bf16.gmra.mxu0 %v528
    %v606 = vpop.f32.mrf.mxu0
    %v607 = vadd.f32 %v547, %v606
    %v608 = vpop.f32.mrf.mxu0
    %v609 = vadd.f32 %v547, %v608
    %610 = vdwg.mxu0
    %611 = vst.msk [vmem:[#allocation10] sm:$0xff] %vm124, %v607
    %612 = vst.msk [vmem:[#allocation10 + $0x8] sm:$0xff] %vm124, %v609
    // Predicated region
    $region62: #{tpu_custom_call.1} parent=1 // pred_check
      _
    $region63: #{tpu_custom_call.1} parent=1 // pred_check_branch
      %614 = sbr.rel (0) target = $region65
    $region64: #{tpu_custom_call.1} parent=1 // pred_region
      %616 = vsyncadd [#allocation4], 0
      %s617 = sshll.u32 [#allocation10], 4
      %s618 = int_to_ptr.vmem [resolvable:$true] %s617
      %s619 = sshll.u32 %s11, 4
      %s620 = int_to_ptr.hbm [resolvable:$true] %s619
      %625 = dma.vmem_to_hbm [thread:$0]  %s618, 256, %s620, [#allocation4], 128, 128, 8
    $region65: #{tpu_custom_call.1} parent=1 // pred_fallthru
      _
    // Predicated region
    $region66: #{tpu_custom_call.1} parent=1 // pred_check
      _
    $region67: #{tpu_custom_call.1} parent=1 // pred_check_branch
      %627 = sbr.rel (0) target = $region69
    $region68: #{tpu_custom_call.1} parent=1 // pred_region
      %629 = dma.done [#allocation4], 256
    $region69: #{tpu_custom_call.1} parent=1 // pred_fallthru
      _
    %630 = vsyncpa [#allocation3], 1
    %631 = vsyncpa [#allocation6], 1
    %632 = vsyncpa [#allocation9], 1
    %633 = vsyncpa [#allocation4], 1

</llo_original>
